<compile_context>
chip_gen: v5e
topology: v5e:2x2
jax: 0.10.0
libtpu: 0.0.40
codegen_flags: <defaults>
</compile_context>

<pallas_src>
import functools
import math

import jax
import jax.numpy as jnp
import numpy as np
from jax import lax
from jax.experimental import pallas as pl
from jax.experimental.pallas import tpu as pltpu


def _mha_kernel(q_ref, k_ref, v_ref, mask_ref, wo_ref, bo_ref, o_ref,
                acc_ref, m_ref, l_ref, *, neg_fill):
    """One (batch n, q-tile qi, kv-tile ki) grid step.

    q_ref : (1, H, Tq, D)  projected + pre-scaled queries (compute dtype)
    k_ref : (1, H, Tk, D)  projected keys
    v_ref : (1, H, Tk, D)  projected values
    mask  : (1, Tq, Tk)    int8, nonzero = masked out
    wo    : (H, D, M)      output-linear weight (grid resident)
    bo    : (1, M)         output-linear bias   (grid resident)
    o_ref : (1, Tq, M)
    acc   : (H, Tq, D) f32 scratch;  m/l: (H, Tq, 1) f32 scratch
    """
    ki = pl.program_id(2)
    nk = pl.num_programs(2)

    @pl.when(ki == 0)
    def _init():
        m_ref[...] = jnp.full(m_ref.shape, -jnp.inf, dtype=jnp.float32)
        l_ref[...] = jnp.zeros_like(l_ref)
        acc_ref[...] = jnp.zeros_like(acc_ref)

    q = q_ref[0]                     # (H, Tq, D)
    k = k_ref[0]                     # (H, Tk, D)
    v = v_ref[0]                     # (H, Tk, D)

    # Head-batched scores on the MXU, f32 accumulation.  Q is pre-scaled by
    # 1/sqrt(D), so masked logits are filled with -1e9 * scale (this matches
    # the reference's masked_fill(-1e9)-BEFORE-scale semantics exactly).
    s = jnp.einsum('hqd,hkd->hqk', q, k, preferred_element_type=jnp.float32)
    s = jnp.where(mask_ref[0][None, :, :] != 0, jnp.float32(neg_fill), s)

    # Online softmax update (all f32).
    m_prev = m_ref[...]                                        # (H, Tq, 1)
    m_new = jnp.maximum(m_prev, jnp.max(s, axis=-1, keepdims=True))
    alpha = jnp.exp(m_prev - m_new)                            # (H, Tq, 1)
    p = jnp.exp(s - m_new)                                     # (H, Tq, Tk)
    l_ref[...] = alpha * l_ref[...] + jnp.sum(p, axis=-1, keepdims=True)
    acc_ref[...] = alpha * acc_ref[...] + jnp.einsum(
        'hqk,hkd->hqd', p.astype(v.dtype), v,
        preferred_element_type=jnp.float32)
    m_ref[...] = m_new

    @pl.when(ki == nk - 1)
    def _finalize():
        # Exact normalization (approx reciprocal removed — correctness fix).
        ctx = acc_ref[...] / l_ref[...]                        # (H, Tq, D)
        # Output linear on the concatenated heads:
        #   concat_h(ctx[h]) @ Wout^T  ==  sum_h ctx[h] @ wo[h]
        per_head = jnp.einsum('hqd,hdm->hqm', ctx.astype(wo_ref.dtype),
                              wo_ref[...], preferred_element_type=jnp.float32)
        out = jnp.sum(per_head, axis=0) + bo_ref[...]
        o_ref[0] = out.astype(o_ref.dtype)


def multi_head_attention(query, key, value, mask,
                         wq, bq, wk, bk, wv, bv, wo, bo,
                         *, block_q=256, block_kv=512,
                         compute_dtype=jnp.bfloat16,
                         vmem_limit_bytes=48 * 1024 * 1024):
    """query/key/value: (N, K, M); mask: (N, K, K), nonzero = masked.
    wq/wk/wv: (H, M, D); bq/bk/bv: (H, D); wo: (H, D, M); bo: (1, M).

    compute_dtype: dtype fed to the MXU (bf16 recommended on v5e/v6e/v7x);
    accumulation and all softmax math stay f32."""
    N, K, M = query.shape
    H, _, D = wq.shape
    scale = 1.0 / math.sqrt(float(D))
    neg_fill = -1e9 * scale   # masked_fill(-1e9) happens before scaling in ref

    block_q = min(block_q, K)
    block_kv = min(block_kv, K)
    assert K % block_q == 0 and K % block_kv == 0, "seq len must tile evenly"

    # Q/K/V projections hoisted out of the flash loop: one wide matmul per
    # input over the whole batch (instead of re-projecting every kv tile once
    # per q tile inside the kernel).  Head-major (N, H, K, D) layout so the
    # kernel gets (H, tile, D) operands with zero in-kernel transposes.  The
    # 1/sqrt(D) scale is folded into Q here (drops a per-step VALU pass).
    hp = lax.Precision.HIGHEST
    qp = (jnp.einsum('nkm,hmd->nhkd', query, wq, precision=hp)
          + bq[None, :, None, :]) * scale
    kp = jnp.einsum('nkm,hmd->nhkd', key, wk, precision=hp) \
        + bk[None, :, None, :]
    vp = jnp.einsum('nkm,hmd->nhkd', value, wv, precision=hp) \
        + bv[None, :, None, :]

    qp = qp.astype(compute_dtype)
    kp = kp.astype(compute_dtype)
    vp = vp.astype(compute_dtype)
    wo_c = wo.astype(compute_dtype)
    bo_f = bo.astype(jnp.float32)
    mask_i8 = mask.astype(jnp.int8)   # 4x less HBM traffic than 32-bit mask

    kernel = functools.partial(_mha_kernel, neg_fill=neg_fill)

    q_spec = pl.BlockSpec((1, H, block_q, D), lambda n, qi, ki: (n, 0, qi, 0))
    kv_spec = pl.BlockSpec((1, H, block_kv, D), lambda n, qi, ki: (n, 0, ki, 0))
    mask_spec = pl.BlockSpec((1, block_q, block_kv),
                             lambda n, qi, ki: (n, qi, ki))
    # Grid-resident output-linear params (small: H*D*M weights, single DMA).
    wo_spec = pl.BlockSpec((H, D, M), lambda n, qi, ki: (0, 0, 0))
    bo_spec = pl.BlockSpec((1, M), lambda n, qi, ki: (0, 0))
    out_spec = pl.BlockSpec((1, block_q, M), lambda n, qi, ki: (n, qi, 0))

    # TODO(synk): for causal masks, a scalar-prefetch (qi, ki) skip table /
    # ki upper bound would halve the kv iterations and drop the mask stream.
    grid_spec = pltpu.PrefetchScalarGridSpec(
        num_scalar_prefetch=0,
        grid=(N, K // block_q, K // block_kv),
        in_specs=[q_spec, kv_spec, kv_spec, mask_spec, wo_spec, bo_spec],
        out_specs=out_spec,
        scratch_shapes=[
            pltpu.VMEM((H, block_q, D), jnp.float32),   # unnormalized head out
            pltpu.VMEM((H, block_q, 1), jnp.float32),   # running max
            pltpu.VMEM((H, block_q, 1), jnp.float32),   # running sum
        ],
    )

    return pl.pallas_call(
        kernel,
        out_shape=jax.ShapeDtypeStruct((N, K, M), query.dtype),
        grid_spec=grid_spec,
        compiler_params=pltpu.CompilerParams(
            dimension_semantics=("parallel", "parallel", "arbitrary"),
            # v7x-safe default (64 MiB/TC physical); raise toward ~100 MiB and
            # enlarge block_kv on v5e/v6e (128 MiB VMEM).
            vmem_limit_bytes=vmem_limit_bytes),
    )(qp, kp, vp, mask_i8, wo_c, bo_f)


def reference_mha(query, key, value, mask, wq, bq, wk, bk, wv, bv, wo, bo):
    """Pure-JAX reference matching the PyTorch module (full f32)."""
    H, M, D = wq.shape
    hp = lax.Precision.HIGHEST
    scale = 1.0 / jnp.sqrt(jnp.float32(D))
    heads = []
    for h in range(H):
        qp = jnp.einsum('nkm,md->nkd', query, wq[h], precision=hp) + bq[h]
        kp = jnp.einsum('nkm,md->nkd', key, wk[h], precision=hp) + bk[h]
        vp = jnp.einsum('nkm,md->nkd', value, wv[h], precision=hp) + bv[h]
        qk = jnp.einsum('nkd,nld->nkl', qp, kp, precision=hp)
        qk = jnp.where(mask != 0, -1e9, qk)
        w = jax.nn.softmax(qk * scale, axis=-1)
        heads.append(jnp.einsum('nkl,nld->nkd', w, vp, precision=hp))
    # concat(heads) @ Wout.T + b  ==  sum_h heads[h] @ wo[h]  + b
    out = sum(jnp.einsum('nkd,dm->nkm', heads[h], wo[h], precision=hp)
              for h in range(H)) + bo
    return out


if __name__ == "__main__":
    # Small forward-consistent shapes: N batch, K seq, M=dim_in, D=dim_out, H heads.
    N, K, M, D, H = 2, 8, 32, 16, 4

    key0 = jax.random.PRNGKey(0)
    keys = jax.random.split(key0, 12)

    query = jax.random.normal(keys[0], (N, K, M), dtype=jnp.float32)
    key_in = jax.random.normal(keys[1], (N, K, M), dtype=jnp.float32)
    value = jax.random.normal(keys[2], (N, K, M), dtype=jnp.float32)
    # Causal-style boolean mask, passed as int8 (nonzero = masked out).
    mask_bool = jnp.triu(jnp.ones((K, K), dtype=bool), k=1)
    mask = jnp.broadcast_to(mask_bool, (N, K, K)).astype(jnp.int8)

    # Deterministic init mirroring the torch init ranges (synthetic weights).
    c_qk = math.sqrt(6.0 / (M + D))
    c_v = math.sqrt(6.0 / (M + D))
    c_in = math.sqrt(6.0 / (M + D * H))
    b_bound = 1.0 / math.sqrt(M)

    wq = jax.random.uniform(keys[3], (H, M, D), jnp.float32, -c_qk, c_qk)
    wk = jax.random.uniform(keys[4], (H, M, D), jnp.float32, -c_qk, c_qk)
    wv = jax.random.uniform(keys[5], (H, M, D), jnp.float32, -c_v, c_v)
    bq = jax.random.uniform(keys[6], (H, D), jnp.float32, -b_bound, b_bound)
    bk = jax.random.uniform(keys[7], (H, D), jnp.float32, -b_bound, b_bound)
    bv = jax.random.uniform(keys[8], (H, D), jnp.float32, -b_bound, b_bound)
    wo = jax.random.uniform(keys[9], (H, D, M), jnp.float32, -c_in, c_in)
    bo = jax.random.uniform(keys[10], (1, M), jnp.float32,
                            -1.0 / math.sqrt(D * H), 1.0 / math.sqrt(D * H))

    y_ref = reference_mha(query, key_in, value, mask,
                          wq, bq, wk, bk, wv, bv, wo, bo)

    # 1) f32 compute path: exact-parity check (this is the correctness fix —
    #    no approx reciprocal, exact divide, f32 matmuls).
    y_f32 = multi_head_attention(query, key_in, value, mask,
                                 wq, bq, wk, bk, wv, bv, wo, bo,
                                 compute_dtype=jnp.float32)
    y_f32 = jax.block_until_ready(y_f32)
    np.testing.assert_allclose(np.asarray(y_f32), np.asarray(y_ref),
                               rtol=1e-3, atol=1e-5)

    # 2) bf16 compute path (the fast MXU path from the perf review): checked
    #    at bf16-appropriate tolerance — structural errors would be O(1).
    y_bf16 = multi_head_attention(query, key_in, value, mask,
                                  wq, bq, wk, bk, wv, bv, wo, bo,
                                  compute_dtype=jnp.bfloat16)
    y_bf16 = jax.block_until_ready(y_bf16)
    np.testing.assert_allclose(np.asarray(y_bf16), np.asarray(y_ref),
                               rtol=5e-2, atol=1e-1)

    print("KERNEL_OK")
</pallas_src>

<mosaic_0001>
module attributes {stable_mosaic.version = 11 : i64} {
  func.func @_mha_kernel(%arg0: i32, %arg1: i32, %arg2: i32, %arg3: memref<1x4x8x16xf32, #tpu.memory_space<vmem>>, %arg4: memref<1x4x8x16xf32, #tpu.memory_space<vmem>>, %arg5: memref<1x4x8x16xf32, #tpu.memory_space<vmem>>, %arg6: memref<1x8x8xi8, #tpu.memory_space<vmem>>, %arg7: memref<4x16x32xf32, #tpu.memory_space<vmem>>, %arg8: memref<1x32xf32, #tpu.memory_space<vmem>>, %arg9: memref<1x8x32xf32, #tpu.memory_space<vmem>>, %arg10: memref<4x8x16xf32, #tpu.memory_space<vmem>>, %arg11: memref<4x8x1xf32, #tpu.memory_space<vmem>>, %arg12: memref<4x8x1xf32, #tpu.memory_space<vmem>>) attributes {dimension_semantics = [#tpu.dimension_semantics<parallel>, #tpu.dimension_semantics<parallel>, #tpu.dimension_semantics<arbitrary>], iteration_bounds = array<i64: 2, 1, 1>, scalar_prefetch = 0 : i64, scratch_operands = 3 : i64, tpu.core_type = #tpu.core_type<tc>, window_params = [{transform_indices = @transform_0, window_bounds = array<i64: 1, 4, 8, 16>}, {transform_indices = @transform_1, window_bounds = array<i64: 1, 4, 8, 16>}, {transform_indices = @transform_2, window_bounds = array<i64: 1, 4, 8, 16>}, {transform_indices = @transform_3, window_bounds = array<i64: 1, 8, 8>}, {pipeline_mode = #tpu.pipeline_mode<synchronous>, transform_indices = @transform_4, window_bounds = array<i64: 4, 16, 32>}, {pipeline_mode = #tpu.pipeline_mode<synchronous>, transform_indices = @transform_5, window_bounds = array<i64: 1, 32>}, {transform_indices = @transform_6, window_bounds = array<i64: 1, 8, 32>}]} {
    %c0_i32 = arith.constant 0 : i32
    %0 = arith.cmpi eq, %arg2, %c0_i32 : i32
    %1 = arith.extui %0 : i1 to i32
    %c0_i32_0 = arith.constant 0 : i32
    %2 = arith.cmpi ne, %1, %c0_i32_0 : i32
    scf.if %2 {
      %cst_39 = arith.constant 0xFF800000 : f32
      %44 = vector.broadcast %cst_39 : f32 to vector<4x8x1xf32>
      %c0_40 = arith.constant 0 : index
      %c0_41 = arith.constant 0 : index
      %c0_42 = arith.constant 0 : index
      %45 = vector.load %arg11[%c0_40, %c0_41, %c0_42] : memref<4x8x1xf32, #tpu.memory_space<vmem>>, vector<4x8x1xf32>
      tpu.vector_store %arg11[%c0_40, %c0_41, %c0_42], %44 {strides = array<i32>} : memref<4x8x1xf32, #tpu.memory_space<vmem>>, vector<4x8x1xf32>,
      %cst_43 = arith.constant 0.000000e+00 : f32
      %46 = vector.broadcast %cst_43 : f32 to vector<4x8x1xf32>
      %c0_44 = arith.constant 0 : index
      %c0_45 = arith.constant 0 : index
      %c0_46 = arith.constant 0 : index
      %47 = vector.load %arg12[%c0_44, %c0_45, %c0_46] : memref<4x8x1xf32, #tpu.memory_space<vmem>>, vector<4x8x1xf32>
      tpu.vector_store %arg12[%c0_44, %c0_45, %c0_46], %46 {strides = array<i32>} : memref<4x8x1xf32, #tpu.memory_space<vmem>>, vector<4x8x1xf32>,
      %cst_47 = arith.constant 0.000000e+00 : f32
      %48 = vector.broadcast %cst_47 : f32 to vector<4x8x16xf32>
      %c0_48 = arith.constant 0 : index
      %c0_49 = arith.constant 0 : index
      %c0_50 = arith.constant 0 : index
      %49 = vector.load %arg10[%c0_48, %c0_49, %c0_50] : memref<4x8x16xf32, #tpu.memory_space<vmem>>, vector<4x8x16xf32>
      tpu.vector_store %arg10[%c0_48, %c0_49, %c0_50], %48 {strides = array<i32>} : memref<4x8x16xf32, #tpu.memory_space<vmem>>, vector<4x8x16xf32>,
    } else {
    }
    %c0 = arith.constant 0 : index
    %c0_1 = arith.constant 0 : index
    %c0_2 = arith.constant 0 : index
    %c0_3 = arith.constant 0 : index
    %3 = vector.load %arg3[%c0, %c0_1, %c0_2, %c0_3] : memref<1x4x8x16xf32, #tpu.memory_space<vmem>>, vector<1x4x8x16xf32>
    %4 = vector.shape_cast %3 : vector<1x4x8x16xf32> to vector<4x8x16xf32>
    %c0_4 = arith.constant 0 : index
    %c0_5 = arith.constant 0 : index
    %c0_6 = arith.constant 0 : index
    %c0_7 = arith.constant 0 : index
    %5 = vector.load %arg4[%c0_4, %c0_5, %c0_6, %c0_7] : memref<1x4x8x16xf32, #tpu.memory_space<vmem>>, vector<1x4x8x16xf32>
    %6 = vector.shape_cast %5 : vector<1x4x8x16xf32> to vector<4x8x16xf32>
    %c0_8 = arith.constant 0 : index
    %c0_9 = arith.constant 0 : index
    %c0_10 = arith.constant 0 : index
    %c0_11 = arith.constant 0 : index
    %7 = vector.load %arg5[%c0_8, %c0_9, %c0_10, %c0_11] : memref<1x4x8x16xf32, #tpu.memory_space<vmem>>, vector<1x4x8x16xf32>
    %8 = vector.shape_cast %7 : vector<1x4x8x16xf32> to vector<4x8x16xf32>
    "tpu.trace_start"() <{level = 10 : i32, message = "hqd,hkd->hqk"}> : () -> ()
    %cst = arith.constant dense<0.000000e+00> : vector<4x8x8xf32>
    %9 = tpu.matmul %4, %6, %cst {dimension_numbers = #tpu.dot_dimension_numbers<[2], [2], [1], [1], [0, 0, 0, 1, 1, 1], [0], [0]>} : vector<4x8x16xf32>, vector<4x8x16xf32>, vector<4x8x8xf32> -> vector<4x8x8xf32>
    "tpu.trace_stop"() : () -> ()
    %c0_12 = arith.constant 0 : index
    %c0_13 = arith.constant 0 : index
    %c0_14 = arith.constant 0 : index
    %10 = vector.load %arg6[%c0_12, %c0_13, %c0_14] : memref<1x8x8xi8, #tpu.memory_space<vmem>>, vector<1x8x8xi8>
    %11 = vector.shape_cast %10 : vector<1x8x8xi8> to vector<8x8xi8>
    %12 = vector.shape_cast %11 : vector<8x8xi8> to vector<1x8x8xi8>
    %c0_i8 = arith.constant 0 : i8
    %13 = vector.broadcast %c0_i8 : i8 to vector<1x8x8xi8>
    %14 = arith.cmpi ne, %12, %13 : vector<1x8x8xi8>
    %cst_15 = arith.constant -2.500000e+08 : f32
    %15 = vector.shape_cast %14 : vector<1x8x8xi1> to vector<1x8x8xi1>
    %16 = vector.broadcast %15 : vector<1x8x8xi1> to vector<4x8x8xi1>
    %17 = vector.broadcast %cst_15 : f32 to vector<4x8x8xf32>
    %18 = arith.select %16, %17, %9 : vector<4x8x8xi1>, vector<4x8x8xf32>
    %c0_16 = arith.constant 0 : index
    %c0_17 = arith.constant 0 : index
    %c0_18 = arith.constant 0 : index
    %19 = vector.load %arg11[%c0_16, %c0_17, %c0_18] : memref<4x8x1xf32, #tpu.memory_space<vmem>>, vector<4x8x1xf32>
    %cst_19 = arith.constant dense<0xFF800000> : vector<4x8xf32>
    %20 = vector.multi_reduction <maximumf>, %18, %cst_19 [2] : vector<4x8x8xf32> to vector<4x8xf32>
    %21 = vector.shape_cast %20 : vector<4x8xf32> to vector<4x8x1xf32>
    %22 = arith.maximumf %19, %21 : vector<4x8x1xf32>
    %23 = arith.subf %19, %22 : vector<4x8x1xf32>
    %24 = math.exp %23 : vector<4x8x1xf32>
    %25 = vector.broadcast %22 : vector<4x8x1xf32> to vector<4x8x8xf32>
    %26 = arith.subf %18, %25 : vector<4x8x8xf32>
    %27 = math.exp %26 : vector<4x8x8xf32>
    %c0_20 = arith.constant 0 : index
    %c0_21 = arith.constant 0 : index
    %c0_22 = arith.constant 0 : index
    %28 = vector.load %arg12[%c0_20, %c0_21, %c0_22] : memref<4x8x1xf32, #tpu.memory_space<vmem>>, vector<4x8x1xf32>
    %29 = arith.mulf %24, %28 : vector<4x8x1xf32>
    %cst_23 = arith.constant dense<0.000000e+00> : vector<4x8xf32>
    %30 = vector.multi_reduction <add>, %27, %cst_23 [2] : vector<4x8x8xf32> to vector<4x8xf32>
    %31 = vector.shape_cast %30 : vector<4x8xf32> to vector<4x8x1xf32>
    %32 = arith.addf %29, %31 : vector<4x8x1xf32>
    %c0_24 = arith.constant 0 : index
    %c0_25 = arith.constant 0 : index
    %c0_26 = arith.constant 0 : index
    %33 = vector.load %arg12[%c0_24, %c0_25, %c0_26] : memref<4x8x1xf32, #tpu.memory_space<vmem>>, vector<4x8x1xf32>
    tpu.vector_store %arg12[%c0_24, %c0_25, %c0_26], %32 {strides = array<i32>} : memref<4x8x1xf32, #tpu.memory_space<vmem>>, vector<4x8x1xf32>,
    %c0_27 = arith.constant 0 : index
    %c0_28 = arith.constant 0 : index
    %c0_29 = arith.constant 0 : index
    %34 = vector.load %arg10[%c0_27, %c0_28, %c0_29] : memref<4x8x16xf32, #tpu.memory_space<vmem>>, vector<4x8x16xf32>
    %35 = vector.broadcast %24 : vector<4x8x1xf32> to vector<4x8x16xf32>
    %36 = arith.mulf %35, %34 : vector<4x8x16xf32>
    "tpu.trace_start"() <{level = 10 : i32, message = "hqk,hkd->hqd"}> : () -> ()
    %cst_30 = arith.constant dense<0.000000e+00> : vector<4x8x16xf32>
    %37 = tpu.matmul %27, %8, %cst_30 {dimension_numbers = #tpu.dot_dimension_numbers<[2], [1], [1], [2], [0, 0, 0, 1, 1, 2], [0], [0]>} : vector<4x8x8xf32>, vector<4x8x16xf32>, vector<4x8x16xf32> -> vector<4x8x16xf32>
    "tpu.trace_stop"() : () -> ()
    %38 = arith.addf %36, %37 : vector<4x8x16xf32>
    %c0_31 = arith.constant 0 : index
    %c0_32 = arith.constant 0 : index
    %c0_33 = arith.constant 0 : index
    %39 = vector.load %arg10[%c0_31, %c0_32, %c0_33] : memref<4x8x16xf32, #tpu.memory_space<vmem>>, vector<4x8x16xf32>
    tpu.vector_store %arg10[%c0_31, %c0_32, %c0_33], %38 {strides = array<i32>} : memref<4x8x16xf32, #tpu.memory_space<vmem>>, vector<4x8x16xf32>,
    %c0_34 = arith.constant 0 : index
    %c0_35 = arith.constant 0 : index
    %c0_36 = arith.constant 0 : index
    %40 = vector.load %arg11[%c0_34, %c0_35, %c0_36] : memref<4x8x1xf32, #tpu.memory_space<vmem>>, vector<4x8x1xf32>
    tpu.vector_store %arg11[%c0_34, %c0_35, %c0_36], %22 {strides = array<i32>} : memref<4x8x1xf32, #tpu.memory_space<vmem>>, vector<4x8x1xf32>,
    %c0_i32_37 = arith.constant 0 : i32
    %41 = arith.cmpi eq, %arg2, %c0_i32_37 : i32
    %42 = arith.extui %41 : i1 to i32
    %c0_i32_38 = arith.constant 0 : i32
    %43 = arith.cmpi ne, %42, %c0_i32_38 : i32
    scf.if %43 {
      %c0_39 = arith.constant 0 : index
      %c0_40 = arith.constant 0 : index
      %c0_41 = arith.constant 0 : index
      %44 = vector.load %arg10[%c0_39, %c0_40, %c0_41] : memref<4x8x16xf32, #tpu.memory_space<vmem>>, vector<4x8x16xf32>
      %c0_42 = arith.constant 0 : index
      %c0_43 = arith.constant 0 : index
      %c0_44 = arith.constant 0 : index
      %45 = vector.load %arg12[%c0_42, %c0_43, %c0_44] : memref<4x8x1xf32, #tpu.memory_space<vmem>>, vector<4x8x1xf32>
      %46 = vector.broadcast %45 : vector<4x8x1xf32> to vector<4x8x16xf32>
      %47 = arith.divf %44, %46 : vector<4x8x16xf32>
      %c0_45 = arith.constant 0 : index
      %c0_46 = arith.constant 0 : index
      %c0_47 = arith.constant 0 : index
      %48 = vector.load %arg7[%c0_45, %c0_46, %c0_47] : memref<4x16x32xf32, #tpu.memory_space<vmem>>, vector<4x16x32xf32>
      "tpu.trace_start"() <{level = 10 : i32, message = "hqd,hdm->hqm"}> : () -> ()
      %cst_48 = arith.constant dense<0.000000e+00> : vector<4x8x32xf32>
      %49 = tpu.matmul %47, %48, %cst_48 {dimension_numbers = #tpu.dot_dimension_numbers<[2], [1], [1], [2], [0, 0, 0, 1, 1, 2], [0], [0]>} : vector<4x8x16xf32>, vector<4x16x32xf32>, vector<4x8x32xf32> -> vector<4x8x32xf32>
      "tpu.trace_stop"() : () -> ()
      %cst_49 = arith.constant dense<0.000000e+00> : vector<8x32xf32>
      %50 = vector.multi_reduction <add>, %49, %cst_49 [0] : vector<4x8x32xf32> to vector<8x32xf32>
      %c0_50 = arith.constant 0 : index
      %c0_51 = arith.constant 0 : index
      %51 = vector.load %arg8[%c0_50, %c0_51] : memref<1x32xf32, #tpu.memory_space<vmem>>, vector<1x32xf32>
      %52 = vector.broadcast %51 : vector<1x32xf32> to vector<8x32xf32>
      %53 = arith.addf %50, %52 : vector<8x32xf32>
      %c0_52 = arith.constant 0 : index
      %c0_53 = arith.constant 0 : index
      %c0_54 = arith.constant 0 : index
      %54 = vector.load %arg9[%c0_52, %c0_53, %c0_54] : memref<1x8x32xf32, #tpu.memory_space<vmem>>, vector<1x8x32xf32>
      %55 = vector.shape_cast %54 : vector<1x8x32xf32> to vector<8x32xf32>
      %56 = vector.shape_cast %53 : vector<8x32xf32> to vector<1x8x32xf32>
      tpu.vector_store %arg9[%c0_52, %c0_53, %c0_54], %56 {strides = array<i32>} : memref<1x8x32xf32, #tpu.memory_space<vmem>>, vector<1x8x32xf32>,
    } else {
    }
    return
  }
  func.func @transform_0(%arg0: i32, %arg1: i32, %arg2: i32) -> (i32, i32, i32, i32) {
    %c0_i32 = arith.constant 0 : i32
    %c0_i32_0 = arith.constant 0 : i32
    %c0_i32_1 = arith.constant 0 : i32
    return %arg0, %c0_i32, %arg1, %c0_i32_0 : i32, i32, i32, i32
  }
  func.func @transform_1(%arg0: i32, %arg1: i32, %arg2: i32) -> (i32, i32, i32, i32) {
    %c0_i32 = arith.constant 0 : i32
    %c0_i32_0 = arith.constant 0 : i32
    %c0_i32_1 = arith.constant 0 : i32
    return %arg0, %c0_i32, %arg2, %c0_i32_0 : i32, i32, i32, i32
  }
  func.func @transform_2(%arg0: i32, %arg1: i32, %arg2: i32) -> (i32, i32, i32, i32) {
    %c0_i32 = arith.constant 0 : i32
    %c0_i32_0 = arith.constant 0 : i32
    %c0_i32_1 = arith.constant 0 : i32
    return %arg0, %c0_i32, %arg2, %c0_i32_0 : i32, i32, i32, i32
  }
  func.func @transform_3(%arg0: i32, %arg1: i32, %arg2: i32) -> (i32, i32, i32) {
    %c0_i32 = arith.constant 0 : i32
    return %arg0, %arg1, %arg2 : i32, i32, i32
  }
  func.func @transform_4(%arg0: i32, %arg1: i32, %arg2: i32) -> (i32, i32, i32) {
    %c0_i32 = arith.constant 0 : i32
    %c0_i32_0 = arith.constant 0 : i32
    %c0_i32_1 = arith.constant 0 : i32
    %c0_i32_2 = arith.constant 0 : i32
    return %c0_i32, %c0_i32_0, %c0_i32_1 : i32, i32, i32
  }
  func.func @transform_5(%arg0: i32, %arg1: i32, %arg2: i32) -> (i32, i32) {
    %c0_i32 = arith.constant 0 : i32
    %c0_i32_0 = arith.constant 0 : i32
    %c0_i32_1 = arith.constant 0 : i32
    return %c0_i32, %c0_i32_0 : i32, i32
  }
  func.func @transform_6(%arg0: i32, %arg1: i32, %arg2: i32) -> (i32, i32, i32) {
    %c0_i32 = arith.constant 0 : i32
    %c0_i32_0 = arith.constant 0 : i32
    return %arg0, %arg1, %c0_i32 : i32, i32, i32
  }
}

</mosaic_0001>

<llo_original>
// kernel: tpu_custom_call.1
$region0: #{tpu_custom_call.1}
  #allocation0 [shape = 'u32[]', space=smem, size = 0x4, offset = 0x4, fixed_abs, tag = 'smem constant byte address 0x4 - core index']
  #allocation1 [shape = 'u32[72,128]{1,0:T(1,128)}', space=vmem, size = 0x9000, scoped, tag = 'internal scratch']
  #allocation2 [shape = 'f32[4,8,16]{2,1,0:T(8,128)}', space=vmem, size = 0x4000, scoped, tag = 'scratch operand']
  #allocation3 [shape = 'f32[4,8,1]{2,1,0:T(8,128)}', space=vmem, size = 0x4000, scoped, tag = 'scratch operand']
  #allocation4 [shape = 'f32[4,8,1]{2,1,0:T(8,128)}', space=vmem, size = 0x4000, scoped, tag = 'scratch operand']
  %s0 = inlined_call_operand.hbm [shape: f32[2,4,8,16], index: 0, kind: input, shape index: {}]
  %s1 = inlined_call_operand.hbm [shape: f32[2,4,8,16], index: 1, kind: input, shape index: {}]
  %s2 = inlined_call_operand.hbm [shape: f32[2,4,8,16], index: 2, kind: input, shape index: {}]
  %s3 = inlined_call_operand.hbm [shape: s8[2,8,8], index: 3, kind: input, shape index: {}]
  %s4 = inlined_call_operand.hbm [shape: f32[4,16,32], index: 4, kind: input, shape index: {}]
  %s5 = inlined_call_operand.vmem [shape: f32[1,32], index: 5, kind: input, shape index: {}]
  %s6 = inlined_call_operand.hbm [shape: f32[2,8,32], index: 6, kind: output, shape index: {}]
  %s7 = sld [smem:[#allocation0]]
  $region85: #{tpu_custom_call.1} parent=0
    _
  %s9 = ssub.s32 1, %s7
  %s10 = scalar_select 0, %s9, %s7
  $region1: #{tpu_custom_call.1} parent=0
    #allocation5 [shape = 'u8[32768]{0}', space=vmem, size = 0x8000, scoped, tag = 'input window, operand 0']
    #allocation6 [shape = 's32[2]{0}', space=sflag, size = 0x8, scoped, tag = 'scoped memory for tpu_custom_call.1']
    #allocation7 [shape = 's32[2]{0}', space=sflag, size = 0x8, scoped, tag = 'scoped memory for tpu_custom_call.1']
    #allocation8 [shape = 'u8[32768]{0}', space=vmem, size = 0x8000, scoped, tag = 'input window, operand 1']
    #allocation9 [shape = 's32[2]{0}', space=sflag, size = 0x8, scoped, tag = 'scoped memory for tpu_custom_call.1']
    #allocation10 [shape = 'u8[32768]{0}', space=vmem, size = 0x8000, scoped, tag = 'input window, operand 2']
    #allocation11 [shape = 'u8[2048]{0}', space=vmem, size = 0x800, scoped, tag = 'input window, operand 3']
    #allocation12 [shape = 's32[2]{0}', space=sflag, size = 0x8, scoped, tag = 'scoped memory for tpu_custom_call.1']
    #allocation13 [shape = 'u8[32768]{0}', space=vmem, size = 0x8000, scoped, tag = 'input window, operand 4, single buffered']
    #allocation14 [shape = 'u8[8192]{0}', space=vmem, size = 0x2000, scoped, tag = 'output window, operand 0']
    %11 = vsyncpa [#allocation6], 0
    %s12 = scalar_lea.sflag [#allocation6], 1
    %13 = vsyncpa %s12, 0
    %14 = vsyncpa [#allocation9], 0
    %s15 = scalar_lea.sflag [#allocation9], 1
    %16 = vsyncpa %s15, 0
    %17 = vsyncpa [#allocation12], 0
    %s18 = scalar_lea.sflag [#allocation12], 1
    %19 = vsyncpa %s18, 0
    %20 = vsyncpa [#allocation7], 0
    %s21 = scalar_lea.sflag [#allocation7], 1
    %22 = vsyncpa %s21, 0
    loop: start=0, step=1, limit=4
    $region2: #{tpu_custom_call.1} parent=1 // loop_pre_header
      _
    $region3: #{tpu_custom_call.1} parent=1 // loop_header
      %s24 = sphi 0, %s28
      %p25 = scmp.ge.s32.totalorder %s24, 4
      %s31 = sphi 0, %s50
      %s32 = sphi 0, %s46
      %s33 = sphi 0, %s42
      %s34 = sphi 0, %s31
      %s35 = sphi 0, %s32
      %s36 = sphi 0, %s33
      %s37 = sphi 0, %s34
      %s38 = sphi 0, %s35
      %s39 = sphi 0, %s36
      %s55 = sphi 0, %s57
      %s58 = sphi 0, %s55
      %s59 = sphi 0, %s58
      %s75 = sphi 0, %s59
      %s83 = sphi 0, %s85
      %s86 = sphi 0, %s83
      %s87 = sphi 0, %s86
      %s103 = sphi 0, %s87
      %s111 = sphi 0, %s113
      %s114 = sphi 0, %s111
      %s115 = sphi 0, %s114
      %s131 = sphi 0, %s115
      %s141 = sphi 0, %s143
      %s144 = sphi 0, %s141
      %s145 = sphi 0, %s144
      %s161 = sphi 0, %s145
      %s165 = sphi 0, %s165
      %s167 = sphi 0, %s165
      %s168 = sphi 0, %s167
      %s182 = sphi 0, %s168
      %s186 = sphi 0, %s186
      %s188 = sphi 0, %s186
      %s189 = sphi 0, %s188
      %s203 = sphi 0, %s189
      %s211 = sphi 0, %s213
      %s214 = sphi 0, %s211
      %s215 = sphi 0, %s214
      %s231 = sphi 0, %s215
    $region4: #{tpu_custom_call.1} parent=1 // loop_header_branch
      %27 = sbr.rel (%p25) target = $region8
    $region5: #{tpu_custom_call.1} parent=1 // loop_body
      %s29 = ssub.s32 %s24, 1
      %s30 = ssub.s32 %s24, 2
      %s40 = sadd.s32 1, %s33
      %p41 = scmp.ge.s32.totalorder %s40, 1
      %s42 = scalar_select %p41, 0, %s40
      %s43 = sadd.s32 1, %s32
      %s44 = scalar_select %p41, %s43, %s32
      %p45 = scmp.ge.s32.totalorder %s44, 1
      %s46 = scalar_select %p45, 0, %s44
      %s47 = sadd.s32 1, %s31
      %s48 = scalar_select %p45, %s47, %s31
      %p49 = scmp.ge.s32.totalorder %s48, 2
      %s50 = scalar_select %p49, 0, %s48
      %s51 = ssub.s32 %s31, %s50
      %s52 = ssub.s32 %s32, %s46
      %s53 = sor.u32 %s51, %s52
      %p54 = scmp.eq.s32.totalorder %s53, 0
      %s56 = sadd.s32 %s55, 1
      %s57 = scalar_select %p54, %s55, %s56
      %p60 = pneg %p54
      %p61 = scmp.eq.s32.totalorder %s24, 1
      %p62 = por %p60, %p61
      %p63 = scmp.ne.s32.totalorder %s55, %s58
      %p64 = scmp.eq.s32.totalorder %s24, 0
      %p65 = por %p63, %p64
      %p66 = scmp.ne.s32.totalorder %s55, %s58
      %p67 = scmp.eq.s32.totalorder %s29, 1
      %p68 = por %p66, %p67
      %p69 = scmp.ne.s32.totalorder %s58, %s59
      %p70 = scmp.eq.s32.totalorder %s29, 0
      %p71 = por %p69, %p70
      %p72 = scmp.ne.s32.totalorder %s58, %s59
      %p73 = scmp.eq.s32.totalorder %s30, 1
      %p74 = por %p72, %p73
      %p76 = scmp.ne.s32.totalorder %s59, %s75
      %p77 = scmp.eq.s32.totalorder %s30, 0
      %p78 = por %p76, %p77
      %s79 = ssub.s32 %s31, %s50
      %s80 = ssub.s32 %s33, %s42
      %s81 = sor.u32 %s79, %s80
      %p82 = scmp.eq.s32.totalorder %s81, 0
      %s84 = sadd.s32 %s83, 1
      %s85 = scalar_select %p82, %s83, %s84
      %p88 = pneg %p82
      %p89 = scmp.eq.s32.totalorder %s24, 1
      %p90 = por %p88, %p89
      %p91 = scmp.ne.s32.totalorder %s83, %s86
      %p92 = scmp.eq.s32.totalorder %s24, 0
      %p93 = por %p91, %p92
      %p94 = scmp.ne.s32.totalorder %s83, %s86
      %p95 = scmp.eq.s32.totalorder %s29, 1
      %p96 = por %p94, %p95
      %p97 = scmp.ne.s32.totalorder %s86, %s87
      %p98 = scmp.eq.s32.totalorder %s29, 0
      %p99 = por %p97, %p98
      %p100 = scmp.ne.s32.totalorder %s86, %s87
      %p101 = scmp.eq.s32.totalorder %s30, 1
      %p102 = por %p100, %p101
      %p104 = scmp.ne.s32.totalorder %s87, %s103
      %p105 = scmp.eq.s32.totalorder %s30, 0
      %p106 = por %p104, %p105
      %s107 = ssub.s32 %s31, %s50
      %s108 = ssub.s32 %s33, %s42
      %s109 = sor.u32 %s107, %s108
      %p110 = scmp.eq.s32.totalorder %s109, 0
      %s112 = sadd.s32 %s111, 1
      %s113 = scalar_select %p110, %s111, %s112
      %p116 = pneg %p110
      %p117 = scmp.eq.s32.totalorder %s24, 1
      %p118 = por %p116, %p117
      %p119 = scmp.ne.s32.totalorder %s111, %s114
      %p120 = scmp.eq.s32.totalorder %s24, 0
      %p121 = por %p119, %p120
      %p122 = scmp.ne.s32.totalorder %s111, %s114
      %p123 = scmp.eq.s32.totalorder %s29, 1
      %p124 = por %p122, %p123
      %p125 = scmp.ne.s32.totalorder %s114, %s115
      %p126 = scmp.eq.s32.totalorder %s29, 0
      %p127 = por %p125, %p126
      %p128 = scmp.ne.s32.totalorder %s114, %s115
      %p129 = scmp.eq.s32.totalorder %s30, 1
      %p130 = por %p128, %p129
      %p132 = scmp.ne.s32.totalorder %s115, %s131
      %p133 = scmp.eq.s32.totalorder %s30, 0
      %p134 = por %p132, %p133
      %s135 = ssub.s32 %s31, %s50
      %s136 = ssub.s32 %s32, %s46
      %s137 = sor.u32 %s135, %s136
      %s138 = ssub.s32 %s33, %s42
      %s139 = sor.u32 %s137, %s138
      %p140 = scmp.eq.s32.totalorder %s139, 0
      %s142 = sadd.s32 %s141, 1
      %s143 = scalar_select %p140, %s141, %s142
      %p146 = pneg %p140
      %p147 = scmp.eq.s32.totalorder %s24, 1
      %p148 = por %p146, %p147
      %p149 = scmp.ne.s32.totalorder %s141, %s144
      %p150 = scmp.eq.s32.totalorder %s24, 0
      %p151 = por %p149, %p150
      %p152 = scmp.ne.s32.totalorder %s141, %s144
      %p153 = scmp.eq.s32.totalorder %s29, 1
      %p154 = por %p152, %p153
      %p155 = scmp.ne.s32.totalorder %s144, %s145
      %p156 = scmp.eq.s32.totalorder %s29, 0
      %p157 = por %p155, %p156
      %p158 = scmp.ne.s32.totalorder %s144, %s145
      %p159 = scmp.eq.s32.totalorder %s30, 1
      %p160 = por %p158, %p159
      %p162 = scmp.ne.s32.totalorder %s145, %s161
      %p163 = scmp.eq.s32.totalorder %s30, 0
      %p164 = por %p162, %p163
      %s166 = sadd.s32 %s165, 1
      %p169 = scmp.eq.s32.totalorder %s24, 1
      %p170 = scmp.ne.s32.totalorder %s165, %s167
      %p171 = scmp.eq.s32.totalorder %s24, 0
      %p172 = por %p170, %p171
      %p173 = scmp.ne.s32.totalorder %s165, %s167
      %p174 = scmp.eq.s32.totalorder %s29, 1
      %p175 = por %p173, %p174
      %p176 = scmp.ne.s32.totalorder %s167, %s168
      %p177 = scmp.eq.s32.totalorder %s29, 0
      %p178 = por %p176, %p177
      %p179 = scmp.ne.s32.totalorder %s167, %s168
      %p180 = scmp.eq.s32.totalorder %s30, 1
      %p181 = por %p179, %p180
      %p183 = scmp.ne.s32.totalorder %s168, %s182
      %p184 = scmp.eq.s32.totalorder %s30, 0
      %p185 = por %p183, %p184
      %s187 = sadd.s32 %s186, 1
      %p190 = scmp.eq.s32.totalorder %s24, 1
      %p191 = scmp.ne.s32.totalorder %s186, %s188
      %p192 = scmp.eq.s32.totalorder %s24, 0
      %p193 = por %p191, %p192
      %p194 = scmp.ne.s32.totalorder %s186, %s188
      %p195 = scmp.eq.s32.totalorder %s29, 1
      %p196 = por %p194, %p195
      %p197 = scmp.ne.s32.totalorder %s188, %s189
      %p198 = scmp.eq.s32.totalorder %s29, 0
      %p199 = por %p197, %p198
      %p200 = scmp.ne.s32.totalorder %s188, %s189
      %p201 = scmp.eq.s32.totalorder %s30, 1
      %p202 = por %p200, %p201
      %p204 = scmp.ne.s32.totalorder %s189, %s203
      %p205 = scmp.eq.s32.totalorder %s30, 0
      %p206 = por %p204, %p205
      %s207 = ssub.s32 %s31, %s50
      %s208 = ssub.s32 %s32, %s46
      %s209 = sor.u32 %s207, %s208
      %p210 = scmp.eq.s32.totalorder %s209, 0
      %s212 = sadd.s32 %s211, 1
      %s213 = scalar_select %p210, %s211, %s212
      %p216 = pneg %p210
      %p217 = scmp.eq.s32.totalorder %s24, 1
      %p218 = por %p216, %p217
      %p219 = scmp.ne.s32.totalorder %s211, %s214
      %p220 = scmp.eq.s32.totalorder %s24, 0
      %p221 = por %p219, %p220
      %p222 = scmp.ne.s32.totalorder %s211, %s214
      %p223 = scmp.eq.s32.totalorder %s29, 1
      %p224 = por %p222, %p223
      %p225 = scmp.ne.s32.totalorder %s214, %s215
      %p226 = scmp.eq.s32.totalorder %s29, 0
      %p227 = por %p225, %p226
      %p228 = scmp.ne.s32.totalorder %s214, %s215
      %p229 = scmp.eq.s32.totalorder %s30, 1
      %p230 = por %p228, %p229
      %p232 = scmp.ne.s32.totalorder %s215, %s231
      %p233 = scmp.eq.s32.totalorder %s30, 0
      %p234 = por %p232, %p233
      %p235 = scmp.le.s32.totalorder 1, %s24
      %p236 = scmp.lt.s32.totalorder %s24, 3
      %p237 = pnand %p235, %p236
      %p238 = pneg %p237
      // Predicated region
      $region9: #{tpu_custom_call.1} parent=5 // pred_check
        _
      $region10: #{tpu_custom_call.1} parent=5 // pred_check_branch
        %240 = sbr.rel (%p237) target = $region12
      $region11: #{tpu_custom_call.1} parent=5 // pred_region
        %s241 = ssub.s32 %s24, 1
        // Predicated region
        $region13: #{tpu_custom_call.1} parent=11 // pred_check
          %p242 = pneg %p178
        $region14: #{tpu_custom_call.1} parent=11 // pred_check_branch
          %244 = sbr.rel (%p242) target = $region16
        $region15: #{tpu_custom_call.1} parent=11 // pred_region
          %246 = vsyncadd [#allocation12], 0
          %s247 = sshll.u32 %s4, 4
          %s248 = int_to_ptr.hbm [resolvable:$true] %s247
          %s249 = sshll.u32 [#allocation13], 4
          %s250 = int_to_ptr.vmem [resolvable:$true] %s249
          %255 = dma.hbm_to_vmem [thread:$0]  %s248, 1024, %s250, [#allocation12], 128, 128, 8
        $region16: #{tpu_custom_call.1} parent=11 // pred_fallthru
          _
        // Predicated region
        $region17: #{tpu_custom_call.1} parent=11 // pred_check
          %p256 = pneg %p199
        $region18: #{tpu_custom_call.1} parent=11 // pred_check_branch
          %258 = sbr.rel (%p256) target = $region20
        $region19: #{tpu_custom_call.1} parent=11 // pred_region
          _
        $region20: #{tpu_custom_call.1} parent=11 // pred_fallthru
          _
      $region12: #{tpu_custom_call.1} parent=5 // pred_fallthru
        _
      %p259 = scmp.lt.s32.totalorder %s24, 2
      // Predicated region
      $region21: #{tpu_custom_call.1} parent=5 // pred_check
        %p260 = pneg %p259
      $region22: #{tpu_custom_call.1} parent=5 // pred_check_branch
        %262 = sbr.rel (%p260) target = $region24
      $region23: #{tpu_custom_call.1} parent=5 // pred_region
        // Predicated region
        $region25: #{tpu_custom_call.1} parent=23 // pred_check
          %p263 = pneg %p65
        $region26: #{tpu_custom_call.1} parent=23 // pred_check_branch
          %265 = sbr.rel (%p263) target = $region28
        $region27: #{tpu_custom_call.1} parent=23 // pred_region
          %s266 = sand.u32 %s55, 1
          %s267 = scalar_lea.sflag [#allocation6], %s266
          %s268 = sand.u32 %s55, 1
          %s269 = smul.addr %s268, 32
          %s270 = scalar_lea.vmem [#allocation5], %s269
          %272 = vsyncadd %s267, 0
          %s273 = smul.addr %s31, 4
          %s274 = sadd.s32 %s32, %s273
          %s275 = smul.addr %s274, 8
          %s276 = scalar_lea.hbm %s0, %s275
          %s277 = sshll.u32 %s276, 4
          %s278 = int_to_ptr.hbm [resolvable:$true] %s277
          %s279 = sshll.u32 %s270, 4
          %s280 = int_to_ptr.vmem [resolvable:$true] %s279
          %285 = dma.hbm_to_vmem [thread:$0]  %s278, 512, %s280, %s267, 128, 128, 8
        $region28: #{tpu_custom_call.1} parent=23 // pred_fallthru
          _
        // Predicated region
        $region29: #{tpu_custom_call.1} parent=23 // pred_check
          %p286 = pneg %p93
        $region30: #{tpu_custom_call.1} parent=23 // pred_check_branch
          %288 = sbr.rel (%p286) target = $region32
        $region31: #{tpu_custom_call.1} parent=23 // pred_region
          %s289 = sand.u32 %s24, 1
          %s290 = scalar_lea.sflag [#allocation9], %s289
          %s291 = sand.u32 %s83, 1
          %s292 = smul.addr %s291, 32
          %s293 = scalar_lea.vmem [#allocation8], %s292
          %295 = vsyncadd %s290, 0
          %s296 = smul.addr %s31, 4
          %s297 = sadd.s32 %s33, %s296
          %s298 = smul.addr %s297, 8
          %s299 = scalar_lea.hbm %s1, %s298
          %s300 = sshll.u32 %s299, 4
          %s301 = int_to_ptr.hbm [resolvable:$true] %s300
          %s302 = sshll.u32 %s293, 4
          %s303 = int_to_ptr.vmem [resolvable:$true] %s302
          %308 = dma.hbm_to_vmem [thread:$0]  %s301, 512, %s303, %s290, 128, 128, 8
        $region32: #{tpu_custom_call.1} parent=23 // pred_fallthru
          _
        // Predicated region
        $region33: #{tpu_custom_call.1} parent=23 // pred_check
          %p309 = pneg %p121
        $region34: #{tpu_custom_call.1} parent=23 // pred_check_branch
          %311 = sbr.rel (%p309) target = $region36
        $region35: #{tpu_custom_call.1} parent=23 // pred_region
          %s312 = sand.u32 %s24, 1
          %s313 = scalar_lea.sflag [#allocation9], %s312
          %s314 = sand.u32 %s111, 1
          %s315 = smul.addr %s314, 32
          %s316 = scalar_lea.vmem [#allocation10], %s315
          %318 = vsyncadd %s313, 0
          %s319 = smul.addr %s31, 4
          %s320 = sadd.s32 %s33, %s319
          %s321 = smul.addr %s320, 8
          %s322 = scalar_lea.hbm %s2, %s321
          %s323 = sshll.u32 %s322, 4
          %s324 = int_to_ptr.hbm [resolvable:$true] %s323
          %s325 = sshll.u32 %s316, 4
          %s326 = int_to_ptr.vmem [resolvable:$true] %s325
          %331 = dma.hbm_to_vmem [thread:$0]  %s324, 512, %s326, %s313, 128, 128, 8
        $region36: #{tpu_custom_call.1} parent=23 // pred_fallthru
          _
        // Predicated region
        $region37: #{tpu_custom_call.1} parent=23 // pred_check
          %p332 = pneg %p151
        $region38: #{tpu_custom_call.1} parent=23 // pred_check_branch
          %334 = sbr.rel (%p332) target = $region40
        $region39: #{tpu_custom_call.1} parent=23 // pred_region
          %s335 = sand.u32 %s24, 1
          %s336 = scalar_lea.sflag [#allocation12], %s335
          %s337 = sand.u32 %s141, 1
          %s338 = smul.addr %s337, 2
          %s339 = scalar_lea.vmem [#allocation11], %s338
          %341 = vsyncadd %s336, 0
          %s342 = sadd.s32 %s33, %s32
          %s343 = sadd.s32 %s342, %s31
          %s344 = smul.addr %s343, 2
          %s345 = scalar_lea.hbm %s3, %s344
          %s347 = sshll.u32 %s345, 4
          %s348 = int_to_ptr.hbm [resolvable:$true] %s347
          %s349 = sshll.u32 %s339, 4
          %s350 = int_to_ptr.vmem [resolvable:$true] %s349
          %352 = dma.hbm_to_vmem [thread:$0]  %s348, 32, %s350, %s336
        $region40: #{tpu_custom_call.1} parent=23 // pred_fallthru
          _
      $region24: #{tpu_custom_call.1} parent=5 // pred_fallthru
        _
      %p353 = scmp.le.s32.totalorder 1, %s24
      %p354 = scmp.lt.s32.totalorder %s24, 3
      %p355 = pnand %p353, %p354
      %p356 = pneg %p355
      // Predicated region
      $region41: #{tpu_custom_call.1} parent=5 // pred_check
        _
      $region42: #{tpu_custom_call.1} parent=5 // pred_check_branch
        %358 = sbr.rel (%p355) target = $region44
      $region43: #{tpu_custom_call.1} parent=5 // pred_region
        %s359 = ssub.s32 %s24, 1
        %s360 = sand.u32 %s58, 1
        %s361 = scalar_lea.sflag [#allocation6], %s360
        %s362 = sand.u32 %s58, 1
        %s363 = smul.addr %s362, 32
        %s364 = scalar_lea.vmem [#allocation5], %s363
        // Predicated region
        $region45: #{tpu_custom_call.1} parent=43 // pred_check
          %p365 = pneg %p71
        $region46: #{tpu_custom_call.1} parent=43 // pred_check_branch
          %367 = sbr.rel (%p365) target = $region48
        $region47: #{tpu_custom_call.1} parent=43 // pred_region
          %369 = dma.done %s361, 512
        $region48: #{tpu_custom_call.1} parent=43 // pred_fallthru
          _
        %s370 = sand.u32 %s29, 1
        %s371 = scalar_lea.sflag [#allocation9], %s370
        %s372 = sand.u32 %s86, 1
        %s373 = smul.addr %s372, 32
        %s374 = scalar_lea.vmem [#allocation8], %s373
        // Predicated region
        $region49: #{tpu_custom_call.1} parent=43 // pred_check
          %p375 = pneg %p99
        $region50: #{tpu_custom_call.1} parent=43 // pred_check_branch
          %377 = sbr.rel (%p375) target = $region52
        $region51: #{tpu_custom_call.1} parent=43 // pred_region
          %379 = dma.done %s371, 512
        $region52: #{tpu_custom_call.1} parent=43 // pred_fallthru
          _
        %s380 = sand.u32 %s29, 1
        %s381 = scalar_lea.sflag [#allocation9], %s380
        %s382 = sand.u32 %s114, 1
        %s383 = smul.addr %s382, 32
        %s384 = scalar_lea.vmem [#allocation10], %s383
        // Predicated region
        $region53: #{tpu_custom_call.1} parent=43 // pred_check
          %p385 = pneg %p127
        $region54: #{tpu_custom_call.1} parent=43 // pred_check_branch
          %387 = sbr.rel (%p385) target = $region56
        $region55: #{tpu_custom_call.1} parent=43 // pred_region
          %389 = dma.done %s381, 512
        $region56: #{tpu_custom_call.1} parent=43 // pred_fallthru
          _
        %s390 = sand.u32 %s29, 1
        %s391 = scalar_lea.sflag [#allocation12], %s390
        %s392 = sand.u32 %s144, 1
        %s393 = smul.addr %s392, 2
        %s394 = scalar_lea.vmem [#allocation11], %s393
        // Predicated region
        $region57: #{tpu_custom_call.1} parent=43 // pred_check
          %p395 = pneg %p157
        $region58: #{tpu_custom_call.1} parent=43 // pred_check_branch
          %397 = sbr.rel (%p395) target = $region60
        $region59: #{tpu_custom_call.1} parent=43 // pred_region
          %399 = dma.done %s391, 32
        $region60: #{tpu_custom_call.1} parent=43 // pred_fallthru
          _
        // Predicated region
        $region61: #{tpu_custom_call.1} parent=43 // pred_check
          %p400 = pneg %p178
        $region62: #{tpu_custom_call.1} parent=43 // pred_check_branch
          %402 = sbr.rel (%p400) target = $region64
        $region63: #{tpu_custom_call.1} parent=43 // pred_region
          %404 = dma.done [#allocation12], 1024
        $region64: #{tpu_custom_call.1} parent=43 // pred_fallthru
          _
        %s405 = sand.u32 %s58, 1
        %s406 = scalar_lea.sflag [#allocation6], %s405
        %s407 = sand.u32 %s58, 1
        %s408 = smul.addr %s407, 32
        %s409 = scalar_lea.vmem [#allocation5], %s408
        %p410 = pneg %p71
        %p411 = pneg %p68
        %s412 = sand.u32 %s29, 1
        %s413 = scalar_lea.sflag [#allocation9], %s412
        %s414 = sand.u32 %s86, 1
        %s415 = smul.addr %s414, 32
        %s416 = scalar_lea.vmem [#allocation8], %s415
        %p417 = pneg %p99
        %p418 = pneg %p96
        %s419 = sand.u32 %s29, 1
        %s420 = scalar_lea.sflag [#allocation9], %s419
        %s421 = sand.u32 %s114, 1
        %s422 = smul.addr %s421, 32
        %s423 = scalar_lea.vmem [#allocation10], %s422
        %p424 = pneg %p127
        %p425 = pneg %p124
        %s426 = sand.u32 %s29, 1
        %s427 = scalar_lea.sflag [#allocation12], %s426
        %s428 = sand.u32 %s144, 1
        %s429 = smul.addr %s428, 2
        %s430 = scalar_lea.vmem [#allocation11], %s429
        %p431 = pneg %p157
        %p432 = pneg %p154
        %p433 = pneg %p178
        %p434 = pneg %p175
        %p435 = pneg %p199
        %p436 = pneg %p196
        %p437 = pneg %p227
        %p438 = pneg %p224
        %s439 = sand.u32 %s214, 1
        %s440 = scalar_lea.sflag [#allocation7], %s439
        %s441 = sand.u32 %s214, 1
        %s442 = smul.addr %s441, 8
        %s443 = scalar_lea.vmem [#allocation14], %s442
        %p446 = scmp.eq.s32.totalorder %s36, 0
        // Predicated region
        $region65: #{tpu_custom_call.1} parent=43 // pred_check
          %p447 = pneg %p446
        $region66: #{tpu_custom_call.1} parent=43 // pred_check_branch
          %449 = sbr.rel (%p447) target = $region68
        $region67: #{tpu_custom_call.1} parent=43 // pred_region
          %vm450 = vcmask 7168
          %451 = vst.msk [vmem:[#allocation3] sm:$0xff] %vm450, -inf
          %452 = vst.msk [vmem:[#allocation3 + $0x8] sm:$0xff] %vm450, -inf
          %453 = vst.msk [vmem:[#allocation3 + $0x10] sm:$0xff] %vm450, -inf
          %454 = vst.msk [vmem:[#allocation3 + $0x18] sm:$0xff] %vm450, -inf
          %455 = vst.msk [vmem:[#allocation4] sm:$0xff] %vm450, 0.0
          %456 = vst.msk [vmem:[#allocation4 + $0x8] sm:$0xff] %vm450, 0.0
          %457 = vst.msk [vmem:[#allocation4 + $0x10] sm:$0xff] %vm450, 0.0
          %458 = vst.msk [vmem:[#allocation4 + $0x18] sm:$0xff] %vm450, 0.0
          %vm459 = vcmask 130048
          %460 = vst.msk [vmem:[#allocation2] sm:$0xff] %vm459, 0.0
          %461 = vst.msk [vmem:[#allocation2 + $0x8] sm:$0xff] %vm459, 0.0
          %462 = vst.msk [vmem:[#allocation2 + $0x10] sm:$0xff] %vm459, 0.0
          %463 = vst.msk [vmem:[#allocation2 + $0x18] sm:$0xff] %vm459, 0.0
        $region68: #{tpu_custom_call.1} parent=43 // pred_fallthru
          _
        %v464 = vld [vmem:[%s364] sm:$0xff]
        %v465 = vld [vmem:[%s364 + $0x8] sm:$0xff]
        %v466 = vld [vmem:[%s364 + $0x10] sm:$0xff]
        %v467 = vld [vmem:[%s364 + $0x18] sm:$0xff]
        %v468 = vld [vmem:[%s374] sm:$0xff]
        %v469 = vld [vmem:[%s374 + $0x8] sm:$0xff]
        %v470 = vld [vmem:[%s374 + $0x10] sm:$0xff]
        %v471 = vld [vmem:[%s374 + $0x18] sm:$0xff]
        %v472 = vld [vmem:[%s384] sm:$0xff]
        %v473 = vld [vmem:[%s384 + $0x8] sm:$0xff]
        %v474 = vld [vmem:[%s384 + $0x10] sm:$0xff]
        %v475 = vld [vmem:[%s384 + $0x18] sm:$0xff]
        %vm476 = vcmask 130048
        %v478 = vsel %vm476, %v464, 0
        %v481 = vsel %vm476, %v468, 0
        %483 = vmatpush.xpose.msra.mxu0 0.0
        %484 = vmatpush.xpose.msra.mxu0 0.0
        %485 = vmatpush.xpose.msra.mxu0 0.0
        %486 = vmatpush.xpose.msra.mxu0 0.0
        %487 = vmatpush.xpose.msra.mxu0 0.0
        %488 = vmatpush.xpose.msra.mxu0 0.0
        %489 = vmatpush.xpose.msra.mxu0 0.0
        %490 = vmatpush.xpose.msra.mxu0 0.0
        %491 = vmatpush.xpose.msra.mxu0 0.0
        %492 = vmatpush.xpose.msra.mxu0 0.0
        %493 = vmatpush.xpose.msra.mxu0 0.0
        %494 = vmatpush.xpose.msra.mxu0 0.0
        %495 = vmatpush.xpose.msra.mxu0 0.0
        %496 = vmatpush.xpose.msra.mxu0 0.0
        %497 = vmatpush.xpose.msra.mxu0 0.0
        %498 = vmatpush.xpose.msra.mxu0 %v481
        %499 = vmatmul.f32.gmra.mxu0 %v478
        %v500 = vpop.f32.mrf.mxu0
        %v501 = vadd.f32 0.0, %v500
        %502 = vdwg.mxu0
        %v504 = vsel %vm476, %v465, 0
        %v507 = vsel %vm476, %v469, 0
        %509 = vmatpush.xpose.msra.mxu0 0.0
        %510 = vmatpush.xpose.msra.mxu0 0.0
        %511 = vmatpush.xpose.msra.mxu0 0.0
        %512 = vmatpush.xpose.msra.mxu0 0.0
        %513 = vmatpush.xpose.msra.mxu0 0.0
        %514 = vmatpush.xpose.msra.mxu0 0.0
        %515 = vmatpush.xpose.msra.mxu0 0.0
        %516 = vmatpush.xpose.msra.mxu0 0.0
        %517 = vmatpush.xpose.msra.mxu0 0.0
        %518 = vmatpush.xpose.msra.mxu0 0.0
        %519 = vmatpush.xpose.msra.mxu0 0.0
        %520 = vmatpush.xpose.msra.mxu0 0.0
        %521 = vmatpush.xpose.msra.mxu0 0.0
        %522 = vmatpush.xpose.msra.mxu0 0.0
        %523 = vmatpush.xpose.msra.mxu0 0.0
        %524 = vmatpush.xpose.msra.mxu0 %v507
        %525 = vmatmul.f32.gmra.mxu0 %v504
        %v526 = vpop.f32.mrf.mxu0
        %v527 = vadd.f32 0.0, %v526
        %528 = vdwg.mxu0
        %v530 = vsel %vm476, %v466, 0
        %v533 = vsel %vm476, %v470, 0
        %535 = vmatpush.xpose.msra.mxu0 0.0
        %536 = vmatpush.xpose.msra.mxu0 0.0
        %537 = vmatpush.xpose.msra.mxu0 0.0
        %538 = vmatpush.xpose.msra.mxu0 0.0
        %539 = vmatpush.xpose.msra.mxu0 0.0
        %540 = vmatpush.xpose.msra.mxu0 0.0
        %541 = vmatpush.xpose.msra.mxu0 0.0
        %542 = vmatpush.xpose.msra.mxu0 0.0
        %543 = vmatpush.xpose.msra.mxu0 0.0
        %544 = vmatpush.xpose.msra.mxu0 0.0
        %545 = vmatpush.xpose.msra.mxu0 0.0
        %546 = vmatpush.xpose.msra.mxu0 0.0
        %547 = vmatpush.xpose.msra.mxu0 0.0
        %548 = vmatpush.xpose.msra.mxu0 0.0
        %549 = vmatpush.xpose.msra.mxu0 0.0
        %550 = vmatpush.xpose.msra.mxu0 %v533
        %551 = vmatmul.f32.gmra.mxu0 %v530
        %v552 = vpop.f32.mrf.mxu0
        %v553 = vadd.f32 0.0, %v552
        %554 = vdwg.mxu0
        %v556 = vsel %vm476, %v467, 0
        %v559 = vsel %vm476, %v471, 0
        %561 = vmatpush.xpose.msra.mxu0 0.0
        %562 = vmatpush.xpose.msra.mxu0 0.0
        %563 = vmatpush.xpose.msra.mxu0 0.0
        %564 = vmatpush.xpose.msra.mxu0 0.0
        %565 = vmatpush.xpose.msra.mxu0 0.0
        %566 = vmatpush.xpose.msra.mxu0 0.0
        %567 = vmatpush.xpose.msra.mxu0 0.0
        %568 = vmatpush.xpose.msra.mxu0 0.0
        %569 = vmatpush.xpose.msra.mxu0 0.0
        %570 = vmatpush.xpose.msra.mxu0 0.0
        %571 = vmatpush.xpose.msra.mxu0 0.0
        %572 = vmatpush.xpose.msra.mxu0 0.0
        %573 = vmatpush.xpose.msra.mxu0 0.0
        %574 = vmatpush.xpose.msra.mxu0 0.0
        %575 = vmatpush.xpose.msra.mxu0 0.0
        %576 = vmatpush.xpose.msra.mxu0 %v559
        %577 = vmatmul.f32.gmra.mxu0 %v556
        %v578 = vpop.f32.mrf.mxu0
        %v579 = vadd.f32 0.0, %v578
        %580 = vdwg.mxu0
        %v581 = vld [vmem:[%s394] sm:$0x3]
        %vm582 = vnez %v581
        %v583 = vsel %vm582, 16843009, 0
        %v584 = vunpack.c.0.s8 %v583
        %vm585 = vcmp.ne.s32.totalorder %v584, 0
        %v586 = vsel %vm585, 1, 0
        %vm587 = vcmp.eq.s32.totalorder %v586, 1
        %v588 = vsel %vm587, -2.5e+08, %v501
        %v589 = vsel %vm587, -2.5e+08, %v527
        %v590 = vsel %vm587, -2.5e+08, %v553
        %v591 = vsel %vm587, -2.5e+08, %v579
        %v592 = vld [vmem:[#allocation3] sm:$0xff]
        %v593 = vld [vmem:[#allocation3 + $0x8] sm:$0xff]
        %v594 = vld [vmem:[#allocation3 + $0x10] sm:$0xff]
        %v595 = vld [vmem:[#allocation3 + $0x18] sm:$0xff]
        %vm596 = vcmask 64512
        %v597 = vsel %vm596, %v588, -inf
        %598 = vmax.xlane.f32.xlu0 %v597
        %v599 = vpop.xlane.xlu0 %598
        %v600 = vsel %vm596, %v589, -inf
        %601 = vmax.xlane.f32.xlu0 %v600
        %v602 = vpop.xlane.xlu0 %601
        %v603 = vsel %vm596, %v590, -inf
        %604 = vmax.xlane.f32.xlu0 %v603
        %v605 = vpop.xlane.xlu0 %604
        %v606 = vsel %vm596, %v591, -inf
        %607 = vmax.xlane.f32.xlu0 %v606
        %v608 = vpop.xlane.xlu0 %607
        %v609 = vmax.f32 %v592, %v599
        %v610 = vmax.f32 %v593, %v602
        %v611 = vmax.f32 %v594, %v605
        %v612 = vmax.f32 %v595, %v608
        %v613 = vsub.f32 %v592, %v609
        %v614 = vsub.f32 %v593, %v610
        %v615 = vsub.f32 %v594, %v611
        %v616 = vsub.f32 %v595, %v612
        %v617 = vmul.f32 %v613, 1.442695
        %v618 = vpow.pop %v617
        %v619 = vmul.f32 %v614, 1.442695
        %v620 = vpow.pop %v619
        %v621 = vmul.f32 %v615, 1.442695
        %v622 = vpow.pop %v621
        %v623 = vmul.f32 %v616, 1.442695
        %v624 = vpow.pop %v623
        %626 = vset.pattern.permute.xlu0 0
        %627 = vperm.xlu0 %626, %v609
        %v628 = vpop.permute.xlu0 %627
        %631 = vset.pattern.permute.xlu0 0
        %632 = vperm.xlu0 %631, %v610
        %v633 = vpop.permute.xlu0 %632
        %636 = vset.pattern.permute.xlu0 0
        %637 = vperm.xlu0 %636, %v611
        %v638 = vpop.permute.xlu0 %637
        %641 = vset.pattern.permute.xlu0 0
        %642 = vperm.xlu0 %641, %v612
        %v643 = vpop.permute.xlu0 %642
        %v645 = vsub.f32 %v588, %v628
        %v646 = vsub.f32 %v589, %v633
        %v647 = vsub.f32 %v590, %v638
        %v648 = vsub.f32 %v591, %v643
        %v649 = vmul.f32 %v645, 1.442695
        %v650 = vpow.pop %v649
        %v651 = vmul.f32 %v646, 1.442695
        %v652 = vpow.pop %v651
        %v653 = vmul.f32 %v647, 1.442695
        %v654 = vpow.pop %v653
        %v655 = vmul.f32 %v648, 1.442695
        %v656 = vpow.pop %v655
        %v657 = vld [vmem:[#allocation4] sm:$0xff]
        %v658 = vld [vmem:[#allocation4 + $0x8] sm:$0xff]
        %v659 = vld [vmem:[#allocation4 + $0x10] sm:$0xff]
        %v660 = vld [vmem:[#allocation4 + $0x18] sm:$0xff]
        %v661 = vmul.f32 %v618, %v657
        %v662 = vmul.f32 %v620, %v658
        %v663 = vmul.f32 %v622, %v659
        %v664 = vmul.f32 %v624, %v660
        %v665 = vsel %vm596, %v650, 0.0
        %666 = vadd.xlane.f32.xlu0 %v665
        %v667 = vpop.xlane.xlu0 %666
        %v668 = vsel %vm596, %v652, 0.0
        %669 = vadd.xlane.f32.xlu0 %v668
        %v670 = vpop.xlane.xlu0 %669
        %v671 = vsel %vm596, %v654, 0.0
        %672 = vadd.xlane.f32.xlu0 %v671
        %v673 = vpop.xlane.xlu0 %672
        %v674 = vsel %vm596, %v656, 0.0
        %675 = vadd.xlane.f32.xlu0 %v674
        %v676 = vpop.xlane.xlu0 %675
        %v677 = vadd.f32 %v661, %v667
        %v678 = vadd.f32 %v662, %v670
        %v679 = vadd.f32 %v663, %v673
        %v680 = vadd.f32 %v664, %v676
        %vm681 = vcmask 7168
        %682 = vst.msk [vmem:[#allocation4] sm:$0xff] %vm681, %v677
        %683 = vst.msk [vmem:[#allocation4 + $0x8] sm:$0xff] %vm681, %v678
        %684 = vst.msk [vmem:[#allocation4 + $0x10] sm:$0xff] %vm681, %v679
        %685 = vst.msk [vmem:[#allocation4 + $0x18] sm:$0xff] %vm681, %v680
        %v686 = vld [vmem:[#allocation2] sm:$0xff]
        %v687 = vld [vmem:[#allocation2 + $0x8] sm:$0xff]
        %v688 = vld [vmem:[#allocation2 + $0x10] sm:$0xff]
        %v689 = vld [vmem:[#allocation2 + $0x18] sm:$0xff]
        %691 = vset.pattern.permute.xlu0 0
        %692 = vperm.xlu0 %691, %v618
        %v693 = vpop.permute.xlu0 %692
        %696 = vset.pattern.permute.xlu0 0
        %697 = vperm.xlu0 %696, %v620
        %v698 = vpop.permute.xlu0 %697
        %701 = vset.pattern.permute.xlu0 0
        %702 = vperm.xlu0 %701, %v622
        %v703 = vpop.permute.xlu0 %702
        %706 = vset.pattern.permute.xlu0 0
        %707 = vperm.xlu0 %706, %v624
        %v708 = vpop.permute.xlu0 %707
        %v710 = vmul.f32 %v693, %v686
        %v711 = vmul.f32 %v698, %v687
        %v712 = vmul.f32 %v703, %v688
        %v713 = vmul.f32 %v708, %v689
        %v715 = vsel %vm596, %v650, 0
        %717 = vmatpush.msra.mxu0 0.0
        %718 = vmatpush.msra.mxu0 0.0
        %719 = vmatpush.msra.mxu0 0.0
        %720 = vmatpush.msra.mxu0 0.0
        %721 = vmatpush.msra.mxu0 0.0
        %722 = vmatpush.msra.mxu0 0.0
        %723 = vmatpush.msra.mxu0 0.0
        %724 = vmatpush.msra.mxu0 0.0
        %725 = vmatpush.msra.mxu0 0.0
        %726 = vmatpush.msra.mxu0 0.0
        %727 = vmatpush.msra.mxu0 0.0
        %728 = vmatpush.msra.mxu0 0.0
        %729 = vmatpush.msra.mxu0 0.0
        %730 = vmatpush.msra.mxu0 0.0
        %731 = vmatpush.msra.mxu0 0.0
        %732 = vmatpush.msra.mxu0 %v472
        %733 = vmatmul.f32.gmra.mxu0 %v715
        %v734 = vpop.f32.mrf.mxu0
        %v735 = vadd.f32 0.0, %v734
        %736 = vdwg.mxu0
        %v738 = vsel %vm596, %v652, 0
        %740 = vmatpush.msra.mxu0 0.0
        %741 = vmatpush.msra.mxu0 0.0
        %742 = vmatpush.msra.mxu0 0.0
        %743 = vmatpush.msra.mxu0 0.0
        %744 = vmatpush.msra.mxu0 0.0
        %745 = vmatpush.msra.mxu0 0.0
        %746 = vmatpush.msra.mxu0 0.0
        %747 = vmatpush.msra.mxu0 0.0
        %748 = vmatpush.msra.mxu0 0.0
        %749 = vmatpush.msra.mxu0 0.0
        %750 = vmatpush.msra.mxu0 0.0
        %751 = vmatpush.msra.mxu0 0.0
        %752 = vmatpush.msra.mxu0 0.0
        %753 = vmatpush.msra.mxu0 0.0
        %754 = vmatpush.msra.mxu0 0.0
        %755 = vmatpush.msra.mxu0 %v473
        %756 = vmatmul.f32.gmra.mxu0 %v738
        %v757 = vpop.f32.mrf.mxu0
        %v758 = vadd.f32 0.0, %v757
        %759 = vdwg.mxu0
        %v761 = vsel %vm596, %v654, 0
        %763 = vmatpush.msra.mxu0 0.0
        %764 = vmatpush.msra.mxu0 0.0
        %765 = vmatpush.msra.mxu0 0.0
        %766 = vmatpush.msra.mxu0 0.0
        %767 = vmatpush.msra.mxu0 0.0
        %768 = vmatpush.msra.mxu0 0.0
        %769 = vmatpush.msra.mxu0 0.0
        %770 = vmatpush.msra.mxu0 0.0
        %771 = vmatpush.msra.mxu0 0.0
        %772 = vmatpush.msra.mxu0 0.0
        %773 = vmatpush.msra.mxu0 0.0
        %774 = vmatpush.msra.mxu0 0.0
        %775 = vmatpush.msra.mxu0 0.0
        %776 = vmatpush.msra.mxu0 0.0
        %777 = vmatpush.msra.mxu0 0.0
        %778 = vmatpush.msra.mxu0 %v474
        %779 = vmatmul.f32.gmra.mxu0 %v761
        %v780 = vpop.f32.mrf.mxu0
        %v781 = vadd.f32 0.0, %v780
        %782 = vdwg.mxu0
        %v784 = vsel %vm596, %v656, 0
        %786 = vmatpush.msra.mxu0 0.0
        %787 = vmatpush.msra.mxu0 0.0
        %788 = vmatpush.msra.mxu0 0.0
        %789 = vmatpush.msra.mxu0 0.0
        %790 = vmatpush.msra.mxu0 0.0
        %791 = vmatpush.msra.mxu0 0.0
        %792 = vmatpush.msra.mxu0 0.0
        %793 = vmatpush.msra.mxu0 0.0
        %794 = vmatpush.msra.mxu0 0.0
        %795 = vmatpush.msra.mxu0 0.0
        %796 = vmatpush.msra.mxu0 0.0
        %797 = vmatpush.msra.mxu0 0.0
        %798 = vmatpush.msra.mxu0 0.0
        %799 = vmatpush.msra.mxu0 0.0
        %800 = vmatpush.msra.mxu0 0.0
        %801 = vmatpush.msra.mxu0 %v475
        %802 = vmatmul.f32.gmra.mxu0 %v784
        %v803 = vpop.f32.mrf.mxu0
        %v804 = vadd.f32 0.0, %v803
        %805 = vdwg.mxu0
        %v806 = vadd.f32 %v710, %v735
        %v807 = vadd.f32 %v711, %v758
        %v808 = vadd.f32 %v712, %v781
        %v809 = vadd.f32 %v713, %v804
        %810 = vst.msk [vmem:[#allocation2] sm:$0xff] %vm476, %v806
        %811 = vst.msk [vmem:[#allocation2 + $0x8] sm:$0xff] %vm476, %v807
        %812 = vst.msk [vmem:[#allocation2 + $0x10] sm:$0xff] %vm476, %v808
        %813 = vst.msk [vmem:[#allocation2 + $0x18] sm:$0xff] %vm476, %v809
        %814 = vst.msk [vmem:[#allocation3] sm:$0xff] %vm681, %v609
        %815 = vst.msk [vmem:[#allocation3 + $0x8] sm:$0xff] %vm681, %v610
        %816 = vst.msk [vmem:[#allocation3 + $0x10] sm:$0xff] %vm681, %v611
        %817 = vst.msk [vmem:[#allocation3 + $0x18] sm:$0xff] %vm681, %v612
        // Predicated region
        $region69: #{tpu_custom_call.1} parent=43 // pred_check
          %p818 = pneg %p446
        $region70: #{tpu_custom_call.1} parent=43 // pred_check_branch
          %820 = sbr.rel (%p818) target = $region72
        $region71: #{tpu_custom_call.1} parent=43 // pred_region
          %v821 = vld [vmem:[#allocation2] sm:$0xff]
          %v822 = vld [vmem:[#allocation2 + $0x8] sm:$0xff]
          %v823 = vld [vmem:[#allocation2 + $0x10] sm:$0xff]
          %v824 = vld [vmem:[#allocation2 + $0x18] sm:$0xff]
          %v825 = vld [vmem:[#allocation4] sm:$0xff]
          %v826 = vld [vmem:[#allocation4 + $0x8] sm:$0xff]
          %v827 = vld [vmem:[#allocation4 + $0x10] sm:$0xff]
          %v828 = vld [vmem:[#allocation4 + $0x18] sm:$0xff]
          %830 = vset.pattern.permute.xlu0 0
          %831 = vperm.xlu0 %830, %v825
          %v832 = vpop.permute.xlu0 %831
          %835 = vset.pattern.permute.xlu0 0
          %836 = vperm.xlu0 %835, %v826
          %v837 = vpop.permute.xlu0 %836
          %840 = vset.pattern.permute.xlu0 0
          %841 = vperm.xlu0 %840, %v827
          %v842 = vpop.permute.xlu0 %841
          %845 = vset.pattern.permute.xlu0 0
          %846 = vperm.xlu0 %845, %v828
          %v847 = vpop.permute.xlu0 %846
          %v849 = vrcp.pop %v832
          %v850 = vmul.f32 %v832, %v849
          %v851 = vsub.f32 1.0, %v850
          %v852 = vmul.f32 %v849, %v851
          %v853 = vadd.f32 %v849, %v852
          %vm854 = vweird.f32 %v832
          %vm855 = vweird.f32 %v849
          %vm856 = vmor %vm854, %vm855
          %v857 = vsel %vm856, %v849, %v853
          %v858 = vand.u32 2147483647, %v832
          %vm859 = vcmp.eq.f32.partialorder %v858, 8.507059e+37
          %v860 = vand.u32 %v832, 2147483648
          %v861 = vor.u32 1.1754944e-38, %v860
          %v862 = vsel %vm859, %v861, %v857
          %v863 = vmul.f32 %v821, %v862
          %v864 = vrcp.pop %v837
          %v865 = vmul.f32 %v837, %v864
          %v866 = vsub.f32 1.0, %v865
          %v867 = vmul.f32 %v864, %v866
          %v868 = vadd.f32 %v864, %v867
          %vm869 = vweird.f32 %v837
          %vm870 = vweird.f32 %v864
          %vm871 = vmor %vm869, %vm870
          %v872 = vsel %vm871, %v864, %v868
          %v873 = vand.u32 2147483647, %v837
          %vm874 = vcmp.eq.f32.partialorder %v873, 8.507059e+37
          %v875 = vand.u32 %v837, 2147483648
          %v876 = vor.u32 1.1754944e-38, %v875
          %v877 = vsel %vm874, %v876, %v872
          %v878 = vmul.f32 %v822, %v877
          %v879 = vrcp.pop %v842
          %v880 = vmul.f32 %v842, %v879
          %v881 = vsub.f32 1.0, %v880
          %v882 = vmul.f32 %v879, %v881
          %v883 = vadd.f32 %v879, %v882
          %vm884 = vweird.f32 %v842
          %vm885 = vweird.f32 %v879
          %vm886 = vmor %vm884, %vm885
          %v887 = vsel %vm886, %v879, %v883
          %v888 = vand.u32 2147483647, %v842
          %vm889 = vcmp.eq.f32.partialorder %v888, 8.507059e+37
          %v890 = vand.u32 %v842, 2147483648
          %v891 = vor.u32 1.1754944e-38, %v890
          %v892 = vsel %vm889, %v891, %v887
          %v893 = vmul.f32 %v823, %v892
          %v894 = vrcp.pop %v847
          %v895 = vmul.f32 %v847, %v894
          %v896 = vsub.f32 1.0, %v895
          %v897 = vmul.f32 %v894, %v896
          %v898 = vadd.f32 %v894, %v897
          %vm899 = vweird.f32 %v847
          %vm900 = vweird.f32 %v894
          %vm901 = vmor %vm899, %vm900
          %v902 = vsel %vm901, %v894, %v898
          %v903 = vand.u32 2147483647, %v847
          %vm904 = vcmp.eq.f32.partialorder %v903, 8.507059e+37
          %v905 = vand.u32 %v847, 2147483648
          %v906 = vor.u32 1.1754944e-38, %v905
          %v907 = vsel %vm904, %v906, %v902
          %v908 = vmul.f32 %v824, %v907
          %v909 = vld [vmem:[#allocation13] sm:$0xff]
          %v910 = vld [vmem:[#allocation13 + $0x8] sm:$0xff]
          %v911 = vld [vmem:[#allocation13 + $0x10] sm:$0xff]
          %v912 = vld [vmem:[#allocation13 + $0x18] sm:$0xff]
          %v913 = vld [vmem:[#allocation13 + $0x20] sm:$0xff]
          %v914 = vld [vmem:[#allocation13 + $0x28] sm:$0xff]
          %v915 = vld [vmem:[#allocation13 + $0x30] sm:$0xff]
          %v916 = vld [vmem:[#allocation13 + $0x38] sm:$0xff]
          %v918 = vsel %vm476, %v863, 0
          %920 = vmatpush.msra.mxu0 0.0
          %921 = vmatpush.msra.mxu0 0.0
          %922 = vmatpush.msra.mxu0 0.0
          %923 = vmatpush.msra.mxu0 0.0
          %924 = vmatpush.msra.mxu0 0.0
          %925 = vmatpush.msra.mxu0 0.0
          %926 = vmatpush.msra.mxu0 0.0
          %927 = vmatpush.msra.mxu0 0.0
          %928 = vmatpush.msra.mxu0 0.0
          %929 = vmatpush.msra.mxu0 0.0
          %930 = vmatpush.msra.mxu0 0.0
          %931 = vmatpush.msra.mxu0 0.0
          %932 = vmatpush.msra.mxu0 0.0
          %933 = vmatpush.msra.mxu0 0.0
          %934 = vmatpush.msra.mxu0 %v910
          %935 = vmatpush.msra.mxu0 %v909
          %936 = vmatmul.f32.gmra.mxu0 %v918
          %v937 = vpop.f32.mrf.mxu0
          %v938 = vadd.f32 0.0, %v937
          %939 = vdwg.mxu0
          %v941 = vsel %vm476, %v878, 0
          %943 = vmatpush.msra.mxu0 0.0
          %944 = vmatpush.msra.mxu0 0.0
          %945 = vmatpush.msra.mxu0 0.0
          %946 = vmatpush.msra.mxu0 0.0
          %947 = vmatpush.msra.mxu0 0.0
          %948 = vmatpush.msra.mxu0 0.0
          %949 = vmatpush.msra.mxu0 0.0
          %950 = vmatpush.msra.mxu0 0.0
          %951 = vmatpush.msra.mxu0 0.0
          %952 = vmatpush.msra.mxu0 0.0
          %953 = vmatpush.msra.mxu0 0.0
          %954 = vmatpush.msra.mxu0 0.0
          %955 = vmatpush.msra.mxu0 0.0
          %956 = vmatpush.msra.mxu0 0.0
          %957 = vmatpush.msra.mxu0 %v912
          %958 = vmatpush.msra.mxu0 %v911
          %959 = vmatmul.f32.gmra.mxu0 %v941
          %v960 = vpop.f32.mrf.mxu0
          %v961 = vadd.f32 0.0, %v960
          %962 = vdwg.mxu0
          %v964 = vsel %vm476, %v893, 0
          %966 = vmatpush.msra.mxu0 0.0
          %967 = vmatpush.msra.mxu0 0.0
          %968 = vmatpush.msra.mxu0 0.0
          %969 = vmatpush.msra.mxu0 0.0
          %970 = vmatpush.msra.mxu0 0.0
          %971 = vmatpush.msra.mxu0 0.0
          %972 = vmatpush.msra.mxu0 0.0
          %973 = vmatpush.msra.mxu0 0.0
          %974 = vmatpush.msra.mxu0 0.0
          %975 = vmatpush.msra.mxu0 0.0
          %976 = vmatpush.msra.mxu0 0.0
          %977 = vmatpush.msra.mxu0 0.0
          %978 = vmatpush.msra.mxu0 0.0
          %979 = vmatpush.msra.mxu0 0.0
          %980 = vmatpush.msra.mxu0 %v914
          %981 = vmatpush.msra.mxu0 %v913
          %982 = vmatmul.f32.gmra.mxu0 %v964
          %v983 = vpop.f32.mrf.mxu0
          %v984 = vadd.f32 0.0, %v983
          %985 = vdwg.mxu0
          %v987 = vsel %vm476, %v908, 0
          %989 = vmatpush.msra.mxu0 0.0
          %990 = vmatpush.msra.mxu0 0.0
          %991 = vmatpush.msra.mxu0 0.0
          %992 = vmatpush.msra.mxu0 0.0
          %993 = vmatpush.msra.mxu0 0.0
          %994 = vmatpush.msra.mxu0 0.0
          %995 = vmatpush.msra.mxu0 0.0
          %996 = vmatpush.msra.mxu0 0.0
          %997 = vmatpush.msra.mxu0 0.0
          %998 = vmatpush.msra.mxu0 0.0
          %999 = vmatpush.msra.mxu0 0.0
          %1000 = vmatpush.msra.mxu0 0.0
          %1001 = vmatpush.msra.mxu0 0.0
          %1002 = vmatpush.msra.mxu0 0.0
          %1003 = vmatpush.msra.mxu0 %v916
          %1004 = vmatpush.msra.mxu0 %v915
          %1005 = vmatmul.f32.gmra.mxu0 %v987
          %v1006 = vpop.f32.mrf.mxu0
          %v1007 = vadd.f32 0.0, %v1006
          %1008 = vdwg.mxu0
          %vm1009 = vcmask 261120
          %v1010 = vsel %vm1009, %v938, 0.0
          %v1011 = vsel %vm1009, %v961, 0.0
          %v1012 = vadd.f32 %v1010, %v1011
          %v1013 = vsel %vm1009, %v984, 0.0
          %v1014 = vadd.f32 %v1012, %v1013
          %v1015 = vsel %vm1009, %v1007, 0.0
          %v1016 = vadd.f32 %v1014, %v1015
          %v1017 = vld [vmem:[%s5] sm:$0x1]
          %v1019 = vperm.slane %v1017, 0
          %v1021 = vadd.f32 %v1016, %v1019
          %1022 = vst.msk [vmem:[%s443] sm:$0xff] %vm1009, %v1021
        $region72: #{tpu_custom_call.1} parent=43 // pred_fallthru
          _
        %s1023 = sand.u32 %s214, 1
        %s1024 = scalar_lea.sflag [#allocation7], %s1023
        %s1025 = sand.u32 %s214, 1
        %s1026 = smul.addr %s1025, 8
        %s1027 = scalar_lea.vmem [#allocation14], %s1026
        // Predicated region
        $region73: #{tpu_custom_call.1} parent=43 // pred_check
          %p1028 = pneg %p224
        $region74: #{tpu_custom_call.1} parent=43 // pred_check_branch
          %1030 = sbr.rel (%p1028) target = $region76
        $region75: #{tpu_custom_call.1} parent=43 // pred_region
          %1032 = vsyncadd %s1024, 0
          %s1033 = sadd.s32 %s35, %s34
          %s1034 = smul.addr %s1033, 8
          %s1035 = scalar_lea.hbm %s6, %s1034
          %s1037 = sshll.u32 %s1027, 4
          %s1038 = int_to_ptr.vmem [resolvable:$true] %s1037
          %s1039 = sshll.u32 %s1035, 4
          %s1040 = int_to_ptr.hbm [resolvable:$true] %s1039
          %1042 = dma.vmem_to_hbm [thread:$0]  %s1038, 128, %s1040, %s1024
        $region76: #{tpu_custom_call.1} parent=43 // pred_fallthru
          _
      $region44: #{tpu_custom_call.1} parent=5 // pred_fallthru
        _
      %p1043 = scmp.le.s32.totalorder 2, %s24
      // Predicated region
      $region77: #{tpu_custom_call.1} parent=5 // pred_check
        %p1044 = pneg %p1043
      $region78: #{tpu_custom_call.1} parent=5 // pred_check_branch
        %1046 = sbr.rel (%p1044) target = $region80
      $region79: #{tpu_custom_call.1} parent=5 // pred_region
        %s1047 = ssub.s32 %s24, 2
        // Predicated region
        $region81: #{tpu_custom_call.1} parent=79 // pred_check
          %p1048 = pneg %p230
        $region82: #{tpu_custom_call.1} parent=79 // pred_check_branch
          %1050 = sbr.rel (%p1048) target = $region84
        $region83: #{tpu_custom_call.1} parent=79 // pred_region
          %s1051 = sand.u32 %s215, 1
          %s1052 = scalar_lea.sflag [#allocation7], %s1051
          %s1053 = sand.u32 %s215, 1
          %s1054 = smul.addr %s1053, 8
          %s1055 = scalar_lea.vmem [#allocation14], %s1054
          %1057 = dma.done %s1052, 128
        $region84: #{tpu_custom_call.1} parent=79 // pred_fallthru
          _
      $region80: #{tpu_custom_call.1} parent=5 // pred_fallthru
        _
    $region6: #{tpu_custom_call.1} parent=1 // loop_footer
      %s28 = sadd.s32 1, %s24
    $region7: #{tpu_custom_call.1} parent=1 // loop_footer_branch
      %23 = sbr.rel target = $region3
    $region8: #{tpu_custom_call.1} parent=1 // loop_exit
      _
    %1058 = vsyncpa [#allocation6], 1
    %s1059 = scalar_lea.sflag [#allocation6], 1
    %1060 = vsyncpa %s1059, 1
    %1061 = vsyncpa [#allocation9], 1
    %s1062 = scalar_lea.sflag [#allocation9], 1
    %1063 = vsyncpa %s1062, 1
    %1064 = vsyncpa [#allocation12], 1
    %s1065 = scalar_lea.sflag [#allocation12], 1
    %1066 = vsyncpa %s1065, 1
    %1067 = vsyncpa [#allocation7], 1
    %s1068 = scalar_lea.sflag [#allocation7], 1
    %1069 = vsyncpa %s1068, 1

</llo_original>
